<compile_context>
chip_gen: v5e
topology: v5e:2x2
jax: 0.10.0
libtpu: 0.0.40
codegen_flags: <defaults>
</compile_context>

<pallas_src>
import math
import numpy as np
import jax
import jax.numpy as jnp
from jax.experimental import pallas as pl
from jax.experimental.pallas import tpu as pltpu

IR_IN_BASE = ((2, 0, +1), (1, 1, -1))      # (mul, l, parity)
IR_OUT     = ((2, 0, +1), (2, 1, -1))
L_F        = 1
P_VAL, P_ARG = 1, 1
KSIZE      = 1
N_COL      = 6 * KSIZE + 1                 # hexagonal neighbourhood size

FIN  = sum(m * (2 * l + 1) for m, l, _ in IR_IN_BASE)   # 5
DOUT = sum(m * (2 * l + 1) for m, l, _ in IR_OUT)       # 8
DSH  = (L_F + 1) ** 2                                   # 4
DCOL = N_COL * FIN                                      # 35

HEXAGON = ((1, 1), (1, 0), (0, -1), (-1, -1), (-1, 0), (0, 1))


def _col_offsets(ksize):
    """Window offsets into the circularly padded lattice, in the same order the
    PyTorch spin2coltri2d_sparse builds its 6*K+1 columns (centre first)."""
    offs = [(ksize, ksize)]
    for k in range(1, ksize + 1):
        for l in range(6):
            offs.append((HEXAGON[l][0] * k + ksize, HEXAGON[l][1] * k + ksize))
    return tuple(offs)


def _wigner_3j(l1, l2, l3):
    """Unit-Frobenius-norm Wigner-3j tensors in e3nn's real basis (where the
    l=1 basis is the Cartesian (x, y, z) vector).  Only l <= 1 is needed."""
    eye = np.eye(3, dtype=np.float64)
    if (l1, l2, l3) == (0, 0, 0):
        return np.ones((1, 1, 1))
    if (l1, l2, l3) == (1, 0, 1):
        return (eye / math.sqrt(3.0)).reshape(3, 1, 3)
    if (l1, l2, l3) == (0, 1, 1):
        return (eye / math.sqrt(3.0)).reshape(1, 3, 3)
    if (l1, l2, l3) == (1, 1, 0):
        return (eye / math.sqrt(3.0)).reshape(3, 3, 1)
    if (l1, l2, l3) == (1, 1, 1):
        eps = np.zeros((3, 3, 3))
        eps[0, 1, 2] = eps[1, 2, 0] = eps[2, 0, 1] = 1.0
        eps[0, 2, 1] = eps[2, 1, 0] = eps[1, 0, 2] = -1.0
        # TODO(synk): global sign convention of e3nn's wigner_3j(1,1,1) is not
        # reproduced bit-exactly; weights here are synthetic so it is immaterial.
        return eps / math.sqrt(6.0)
    raise NotImplementedError(f"w3j({l1},{l2},{l3}) not tabulated (l<=1 only)")


def build_tp_tensor(key):
    """Dense bilinear tensor T[i, j, o] with
         out[..., o] = sum_{i,j} col[..., i] * sph[..., j] * T[i, j, o],
    where col is the gathered (6K+1)-column feature (dim N_COL*FIN) and sph are
    the spin spherical harmonics.  The harmonic constants (normalize=False,
    'integral' normalization) are folded into T so the kernel can use
    sph = [1, sx, sy, sz].  Reproduces e3nn o3.TensorProduct ('uvw',
    irrep_normalization='component', path_normalization='element') with
    internal weights ~ N(0, 1) (deterministic synthetic init)."""
    ir_in = list(IR_IN_BASE) * N_COL                      # Irreps * (6K+1)
    ir_f = [(1, l, P_VAL * P_ARG ** l) for l in range(L_F + 1)]
    ir_out = list(IR_OUT)

    def offsets(irreps):
        offs, o = [], 0
        for mul, l, _ in irreps:
            offs.append(o)
            o += mul * (2 * l + 1)
        return offs, o

    off1, d1 = offsets(ir_in)
    off2, d2 = offsets(ir_f)
    offo, do = offsets(ir_out)
    assert (d1, d2, do) == (DCOL, DSH, DOUT)

    instrs = [(a, b, c)
              for a in range(len(ir_in))
              for b in range(len(ir_f))
              for c in range(len(ir_out))
              if abs(ir_in[a][1] - ir_f[b][1]) <= ir_out[c][1] <= ir_in[a][1] + ir_f[b][1]
              and ir_in[a][2] * ir_f[b][2] == ir_out[c][2]]

    # path_normalization='element': denominator per output irrep
    denom = {}
    for a, b, c in instrs:
        denom[c] = denom.get(c, 0.0) + ir_in[a][0] * ir_f[b][0]

    T = np.zeros((d1, d2, do), dtype=np.float64)
    wkeys = jax.random.split(key, len(instrs))
    for (a, b, c), wk in zip(instrs, wkeys):
        mul_a, l_a, _ = ir_in[a]
        mul_b, l_b, _ = ir_f[b]
        mul_c, l_c, _ = ir_out[c]
        alpha = (2 * l_c + 1) / denom[c]                  # irrep_normalization='component'
        w = np.asarray(jax.random.normal(wk, (mul_a, mul_b, mul_c), jnp.float32),
                       dtype=np.float64)
        cg = _wigner_3j(l_a, l_b, l_c)
        blk = math.sqrt(alpha) * np.einsum('uvw,ijk->uivjwk', w, cg)
        da, db, dc = mul_a * (2 * l_a + 1), mul_b * (2 * l_b + 1), mul_c * (2 * l_c + 1)
        T[off1[a]:off1[a] + da, off2[b]:off2[b] + db, offo[c]:offo[c] + dc] += \
            blk.reshape(da, db, dc)

    # Fold spherical-harmonic constants:  Y_l = sqrt(2l+1)/sqrt(4*pi) * poly_l(spin)
    for l in range(L_F + 1):
        T[:, l * l:(l + 1) * (l + 1), :] *= math.sqrt(2 * l + 1) / math.sqrt(4.0 * math.pi)

    return jnp.asarray(T, dtype=jnp.float32)


# ----------------------------- Pallas kernel --------------------------------
def _spinconv_kernel(col_ref, spin_ref, t_ref, out_ref):
    # col_ref : (DCOL, TP)       pre-gathered hex columns, spatial index on lanes
    # spin_ref: (3,    TP)       classical spin components (f32)
    # t_ref   : (DSH*DOUT, DCOL) fused TP tensor, harmonic-major rows
    # out_ref : (DOUT, TP)       lane-dense output slab
    y = jnp.dot(t_ref[...], col_ref[...],
                preferred_element_type=jnp.float32)           # one MXU contraction, K=DCOL
    acc = y[0:DOUT, :]                                        # l=0 harmonic (constant folded into T)
    for j in range(1, DSH):                                   # l=1 harmonics: 3 dense (8,TP) FMAs
        acc = acc + spin_ref[j - 1:j, :] * y[j * DOUT:(j + 1) * DOUT, :]
    out_ref[...] = acc


def spin_conv_tri2d_sparse(feat, spin, t_tensor, *, tile_rows=None, use_bf16_mxu=False):
    """feat: (N, Lx, Ly, FIN), spin: (N, Lx, Ly, 3) -> (N, Lx, Ly, DOUT)."""
    N, Lx, Ly, fin = feat.shape
    assert fin == FIN and spin.shape == (N, Lx, Ly, 3)
    K = KSIZE
    R = N * Lx * Ly
    offs = _col_offsets(K)

    # ---- glue (cheap XLA layout plumbing) -----------------------------------
    # circular padding (== F.pad 'circular') + hexagonal 7-column pre-gather,
    # then transpose so the flattened spatial index sits on lanes.
    fp = jnp.pad(feat.astype(jnp.float32), ((0, 0), (K, K), (K, K), (0, 0)), mode='wrap')
    cols = jnp.stack([fp[:, ix:ix + Lx, iy:iy + Ly, :] for ix, iy in offs], axis=3)
    colT = cols.reshape(R, DCOL).T                            # (DCOL, R)
    spinT = spin.astype(jnp.float32).reshape(R, 3).T          # (3, R)

    # fused TP tensor, harmonic-major rows: t2[j*DOUT + o, i] = T[i, j, o]
    t2 = jnp.transpose(t_tensor, (1, 2, 0)).reshape(DSH * DOUT, DCOL)

    # row tiling: lanes multiple of 128, aim for >=2 grid steps (v7x dual TC).
    if tile_rows is None:
        r128 = -(-R // 128) * 128
        tile_rows = max(128, min(1024, (r128 // 256) * 128))
    Rpad = -(-R // tile_rows) * tile_rows
    colT = jnp.pad(colT, ((0, 0), (0, Rpad - R)))
    spinT = jnp.pad(spinT, ((0, 0), (0, Rpad - R)))

    # optional bf16 MXU operands (v5e/v6e bandwidth); epilogue stays f32.
    mxu_dtype = jnp.bfloat16 if use_bf16_mxu else jnp.float32
    colT = colT.astype(mxu_dtype)
    t2 = t2.astype(mxu_dtype)

    grid = (Rpad // tile_rows,)
    # Per-step VMEM: (35+3+8+32ish) * tile_rows * 4 B, double-buffered -> well
    # under the default scoped VMEM on v5e/v6e (128 MiB) and v7x (64 MiB).
    outT = pl.pallas_call(
        _spinconv_kernel,
        out_shape=jax.ShapeDtypeStruct((DOUT, Rpad), jnp.float32),
        grid_spec=pltpu.PrefetchScalarGridSpec(
            num_scalar_prefetch=0,
            grid=grid,
            in_specs=[
                pl.BlockSpec((DCOL, tile_rows), lambda r: (0, r)),
                pl.BlockSpec((3, tile_rows), lambda r: (0, r)),
                pl.BlockSpec((DSH * DOUT, DCOL), lambda r: (0, 0)),   # resident, loaded once
            ],
            out_specs=pl.BlockSpec((DOUT, tile_rows), lambda r: (0, r)),
        ),
        compiler_params=pltpu.CompilerParams(dimension_semantics=("parallel",)),
    )(colT, spinT, t2)

    return outT[:, :R].T.reshape(N, Lx, Ly, DOUT)


# ------------------------- pure-JAX reference (check) ------------------------
def _reference(feat, spin, t_tensor):
    N, Lx, Ly, _ = feat.shape
    K = KSIZE
    fp = jnp.pad(feat, ((0, 0), (K, K), (K, K), (0, 0)), mode='wrap')
    cols = [fp[:, ix:ix + Lx, iy:iy + Ly, :] for ix, iy in _col_offsets(K)]
    col = jnp.concatenate(cols, axis=-1)                     # (N, Lx, Ly, N_COL*FIN)
    sph = jnp.concatenate([jnp.ones(spin.shape[:-1] + (1,)), spin], axis=-1)
    return jnp.einsum('nxyi,nxyj,ijo->nxyo', col, sph, t_tensor,
                      precision=jax.lax.Precision.HIGHEST)


if __name__ == "__main__":
    key = jax.random.PRNGKey(0)
    k_feat, k_spin, k_w = jax.random.split(key, 3)

    N, Lx, Ly = 2, 16, 16                                    # R = 512 -> 2 parallel grid steps
    feat = jax.random.normal(k_feat, (N, Lx, Ly, FIN), dtype=jnp.float32)
    spin = jax.random.normal(k_spin, (N, Lx, Ly, 3), dtype=jnp.float32)
    spin = spin / jnp.linalg.norm(spin, axis=-1, keepdims=True)   # classical unit spins

    t_tensor = build_tp_tensor(k_w)                               # (DCOL, DSH, DOUT)

    out = spin_conv_tri2d_sparse(feat, spin, t_tensor)
    jax.block_until_ready(out)

    assert out.shape == (N, Lx, Ly, DOUT)
    assert bool(jnp.all(jnp.isfinite(out)))

    ref = _reference(feat, spin, t_tensor)
    rel_err = float(jnp.max(jnp.abs(out - ref)) / (jnp.max(jnp.abs(ref)) + 1e-6))
    # Documented tolerance: the reference uses Precision.HIGHEST, while the
    # in-kernel MXU dot uses the TPU default f32 path (bf16 operand mantissa
    # passes); with K=35 the expected relative error is O(1e-3).  1e-2 leaves
    # margin; enabling use_bf16_mxu consumes more of this budget.
    assert rel_err < 1e-2, f"mismatch vs reference: rel_err={rel_err}"

    print("KERNEL_OK")
</pallas_src>

<mosaic_0001>
module attributes {stable_mosaic.version = 11 : i64} {
  func.func @_spinconv_kernel(%arg0: i32, %arg1: memref<35x256xf32, #tpu.memory_space<vmem>>, %arg2: memref<3x256xf32, #tpu.memory_space<vmem>>, %arg3: memref<32x35xf32, #tpu.memory_space<vmem>>, %arg4: memref<8x256xf32, #tpu.memory_space<vmem>>) attributes {dimension_semantics = [#tpu.dimension_semantics<parallel>], iteration_bounds = array<i64: 2>, scalar_prefetch = 0 : i64, scratch_operands = 0 : i64, tpu.core_type = #tpu.core_type<tc>, window_params = [{transform_indices = @transform_0, window_bounds = array<i64: 35, 256>}, {transform_indices = @transform_1, window_bounds = array<i64: 3, 256>}, {pipeline_mode = #tpu.pipeline_mode<synchronous>, transform_indices = @transform_2, window_bounds = array<i64: 32, 35>}, {transform_indices = @transform_3, window_bounds = array<i64: 8, 256>}]} {
    %c0 = arith.constant 0 : index
    %c0_0 = arith.constant 0 : index
    %0 = vector.load %arg3[%c0, %c0_0] : memref<32x35xf32, #tpu.memory_space<vmem>>, vector<32x35xf32>
    %c0_1 = arith.constant 0 : index
    %c0_2 = arith.constant 0 : index
    %1 = vector.load %arg1[%c0_1, %c0_2] : memref<35x256xf32, #tpu.memory_space<vmem>>, vector<35x256xf32>
    %cst = arith.constant dense<0.000000e+00> : vector<32x256xf32>
    %2 = tpu.matmul %0, %1, %cst {dimension_numbers = #tpu.dot_dimension_numbers<[1], [0], [0], [1], [0, 0, 1, 1], [], []>} : vector<32x35xf32>, vector<35x256xf32>, vector<32x256xf32> -> vector<32x256xf32>
    %3 = vector.extract_strided_slice %2 {offsets = [0, 0], sizes = [8, 256], strides = [1, 1]} : vector<32x256xf32> to vector<8x256xf32>
    %c0_3 = arith.constant 0 : index
    %c0_4 = arith.constant 0 : index
    %4 = vector.load %arg2[%c0_3, %c0_4] : memref<3x256xf32, #tpu.memory_space<vmem>>, vector<1x256xf32>
    %5 = vector.extract_strided_slice %2 {offsets = [8, 0], sizes = [8, 256], strides = [1, 1]} : vector<32x256xf32> to vector<8x256xf32>
    %6 = vector.broadcast %4 : vector<1x256xf32> to vector<8x256xf32>
    %7 = arith.mulf %6, %5 : vector<8x256xf32>
    %8 = arith.addf %3, %7 : vector<8x256xf32>
    %c1 = arith.constant 1 : index
    %c0_5 = arith.constant 0 : index
    %9 = vector.load %arg2[%c1, %c0_5] : memref<3x256xf32, #tpu.memory_space<vmem>>, vector<1x256xf32>
    %10 = vector.extract_strided_slice %2 {offsets = [16, 0], sizes = [8, 256], strides = [1, 1]} : vector<32x256xf32> to vector<8x256xf32>
    %11 = vector.broadcast %9 : vector<1x256xf32> to vector<8x256xf32>
    %12 = arith.mulf %11, %10 : vector<8x256xf32>
    %13 = arith.addf %8, %12 : vector<8x256xf32>
    %c2 = arith.constant 2 : index
    %c0_6 = arith.constant 0 : index
    %14 = vector.load %arg2[%c2, %c0_6] : memref<3x256xf32, #tpu.memory_space<vmem>>, vector<1x256xf32>
    %15 = vector.extract_strided_slice %2 {offsets = [24, 0], sizes = [8, 256], strides = [1, 1]} : vector<32x256xf32> to vector<8x256xf32>
    %16 = vector.broadcast %14 : vector<1x256xf32> to vector<8x256xf32>
    %17 = arith.mulf %16, %15 : vector<8x256xf32>
    %18 = arith.addf %13, %17 : vector<8x256xf32>
    %c0_7 = arith.constant 0 : index
    %c0_8 = arith.constant 0 : index
    %19 = vector.load %arg4[%c0_7, %c0_8] : memref<8x256xf32, #tpu.memory_space<vmem>>, vector<8x256xf32>
    tpu.vector_store %arg4[%c0_7, %c0_8], %18 {strides = array<i32>} : memref<8x256xf32, #tpu.memory_space<vmem>>, vector<8x256xf32>,
    return
  }
  func.func @transform_0(%arg0: i32) -> (i32, i32) {
    %c0_i32 = arith.constant 0 : i32
    %c0_i32_0 = arith.constant 0 : i32
    return %c0_i32, %arg0 : i32, i32
  }
  func.func @transform_1(%arg0: i32) -> (i32, i32) {
    %c0_i32 = arith.constant 0 : i32
    %c0_i32_0 = arith.constant 0 : i32
    return %c0_i32, %arg0 : i32, i32
  }
  func.func @transform_2(%arg0: i32) -> (i32, i32) {
    %c0_i32 = arith.constant 0 : i32
    %c0_i32_0 = arith.constant 0 : i32
    %c0_i32_1 = arith.constant 0 : i32
    return %c0_i32, %c0_i32_0 : i32, i32
  }
  func.func @transform_3(%arg0: i32) -> (i32, i32) {
    %c0_i32 = arith.constant 0 : i32
    %c0_i32_0 = arith.constant 0 : i32
    return %c0_i32, %arg0 : i32, i32
  }
}

</mosaic_0001>

<llo_original>
// kernel: tpu_custom_call.1
$region0: #{tpu_custom_call.1}
  #allocation0 [shape = 'u32[]', space=smem, size = 0x4, offset = 0x4, fixed_abs, tag = 'smem constant byte address 0x4 - core index']
  #allocation1 [shape = 'u32[72,128]{1,0:T(1,128)}', space=vmem, size = 0x9000, scoped, tag = 'internal scratch']
  %s0 = inlined_call_operand.hbm [shape: f32[35,512], index: 0, kind: input, shape index: {}]
  %s1 = inlined_call_operand.hbm [shape: f32[3,512], index: 1, kind: input, shape index: {}]
  %s2 = inlined_call_operand.hbm [shape: f32[32,35], index: 2, kind: input, shape index: {}]
  %s3 = inlined_call_operand.hbm [shape: f32[8,512], index: 3, kind: output, shape index: {}]
  %s4 = sld [smem:[#allocation0]]
  $region57: #{tpu_custom_call.1} parent=0
    _
  %s6 = ssub.s32 1, %s4
  %s7 = scalar_select 0, %s6, %s4
  $region1: #{tpu_custom_call.1} parent=0
    #allocation2 [shape = 'u8[81920]{0}', space=vmem, size = 0x14000, scoped, tag = 'input window, operand 0']
    #allocation3 [shape = 's32[2]{0}', space=sflag, size = 0x8, scoped, tag = 'scoped memory for tpu_custom_call.1']
    #allocation4 [shape = 's32[2]{0}', space=sflag, size = 0x8, scoped, tag = 'scoped memory for tpu_custom_call.1']
    #allocation5 [shape = 'u8[8192]{0}', space=vmem, size = 0x2000, scoped, tag = 'input window, operand 1']
    #allocation6 [shape = 's32[2]{0}', space=sflag, size = 0x8, scoped, tag = 'scoped memory for tpu_custom_call.1']
    #allocation7 [shape = 'u8[16384]{0}', space=vmem, size = 0x4000, scoped, tag = 'input window, operand 2, single buffered']
    #allocation8 [shape = 'u8[16384]{0}', space=vmem, size = 0x4000, scoped, tag = 'output window, operand 0']
    %8 = vsyncpa [#allocation3], 0
    %s9 = scalar_lea.sflag [#allocation3], 1
    %10 = vsyncpa %s9, 0
    %11 = vsyncpa [#allocation6], 0
    %s12 = scalar_lea.sflag [#allocation6], 1
    %13 = vsyncpa %s12, 0
    %14 = vsyncpa [#allocation4], 0
    %s15 = scalar_lea.sflag [#allocation4], 1
    %16 = vsyncpa %s15, 0
    loop: start=0, step=1, limit=4
    $region2: #{tpu_custom_call.1} parent=1 // loop_pre_header
      _
    $region3: #{tpu_custom_call.1} parent=1 // loop_header
      %s18 = sphi 0, %s22
      %p19 = scmp.ge.s32.totalorder %s18, 4
      %s28 = sphi 0, %s30
      %s31 = sphi 0, %s28
      %s32 = sphi 0, %s31
      %s48 = sphi 0, %s32
      %s54 = sphi 0, %s56
      %s57 = sphi 0, %s54
      %s58 = sphi 0, %s57
      %s74 = sphi 0, %s58
      %s78 = sphi 0, %s78
      %s80 = sphi 0, %s78
      %s81 = sphi 0, %s80
      %s95 = sphi 0, %s81
      %s101 = sphi 0, %s103
      %s104 = sphi 0, %s101
      %s105 = sphi 0, %s104
      %s121 = sphi 0, %s105
    $region4: #{tpu_custom_call.1} parent=1 // loop_header_branch
      %21 = sbr.rel (%p19) target = $region8
    $region5: #{tpu_custom_call.1} parent=1 // loop_body
      %s23 = ssub.s32 %s18, 1
      %s24 = ssub.s32 %s18, 2
      %s25 = sadd.s32 %s18, 1
      %s26 = ssub.s32 %s18, %s25
      %p27 = scmp.eq.s32.totalorder %s26, 0
      %s29 = sadd.s32 %s28, 1
      %s30 = scalar_select %p27, %s28, %s29
      %p33 = pneg %p27
      %p34 = scmp.eq.s32.totalorder %s18, 1
      %p35 = por %p33, %p34
      %p36 = scmp.ne.s32.totalorder %s28, %s31
      %p37 = scmp.eq.s32.totalorder %s18, 0
      %p38 = por %p36, %p37
      %p39 = scmp.ne.s32.totalorder %s28, %s31
      %p40 = scmp.eq.s32.totalorder %s23, 1
      %p41 = por %p39, %p40
      %p42 = scmp.ne.s32.totalorder %s31, %s32
      %p43 = scmp.eq.s32.totalorder %s23, 0
      %p44 = por %p42, %p43
      %p45 = scmp.ne.s32.totalorder %s31, %s32
      %p46 = scmp.eq.s32.totalorder %s24, 1
      %p47 = por %p45, %p46
      %p49 = scmp.ne.s32.totalorder %s32, %s48
      %p50 = scmp.eq.s32.totalorder %s24, 0
      %p51 = por %p49, %p50
      %s52 = ssub.s32 %s18, %s25
      %p53 = scmp.eq.s32.totalorder %s52, 0
      %s55 = sadd.s32 %s54, 1
      %s56 = scalar_select %p53, %s54, %s55
      %p59 = pneg %p53
      %p60 = scmp.eq.s32.totalorder %s18, 1
      %p61 = por %p59, %p60
      %p62 = scmp.ne.s32.totalorder %s54, %s57
      %p63 = scmp.eq.s32.totalorder %s18, 0
      %p64 = por %p62, %p63
      %p65 = scmp.ne.s32.totalorder %s54, %s57
      %p66 = scmp.eq.s32.totalorder %s23, 1
      %p67 = por %p65, %p66
      %p68 = scmp.ne.s32.totalorder %s57, %s58
      %p69 = scmp.eq.s32.totalorder %s23, 0
      %p70 = por %p68, %p69
      %p71 = scmp.ne.s32.totalorder %s57, %s58
      %p72 = scmp.eq.s32.totalorder %s24, 1
      %p73 = por %p71, %p72
      %p75 = scmp.ne.s32.totalorder %s58, %s74
      %p76 = scmp.eq.s32.totalorder %s24, 0
      %p77 = por %p75, %p76
      %s79 = sadd.s32 %s78, 1
      %p82 = scmp.eq.s32.totalorder %s18, 1
      %p83 = scmp.ne.s32.totalorder %s78, %s80
      %p84 = scmp.eq.s32.totalorder %s18, 0
      %p85 = por %p83, %p84
      %p86 = scmp.ne.s32.totalorder %s78, %s80
      %p87 = scmp.eq.s32.totalorder %s23, 1
      %p88 = por %p86, %p87
      %p89 = scmp.ne.s32.totalorder %s80, %s81
      %p90 = scmp.eq.s32.totalorder %s23, 0
      %p91 = por %p89, %p90
      %p92 = scmp.ne.s32.totalorder %s80, %s81
      %p93 = scmp.eq.s32.totalorder %s24, 1
      %p94 = por %p92, %p93
      %p96 = scmp.ne.s32.totalorder %s81, %s95
      %p97 = scmp.eq.s32.totalorder %s24, 0
      %p98 = por %p96, %p97
      %s99 = ssub.s32 %s18, %s25
      %p100 = scmp.eq.s32.totalorder %s99, 0
      %s102 = sadd.s32 %s101, 1
      %s103 = scalar_select %p100, %s101, %s102
      %p106 = pneg %p100
      %p107 = scmp.eq.s32.totalorder %s18, 1
      %p108 = por %p106, %p107
      %p109 = scmp.ne.s32.totalorder %s101, %s104
      %p110 = scmp.eq.s32.totalorder %s18, 0
      %p111 = por %p109, %p110
      %p112 = scmp.ne.s32.totalorder %s101, %s104
      %p113 = scmp.eq.s32.totalorder %s23, 1
      %p114 = por %p112, %p113
      %p115 = scmp.ne.s32.totalorder %s104, %s105
      %p116 = scmp.eq.s32.totalorder %s23, 0
      %p117 = por %p115, %p116
      %p118 = scmp.ne.s32.totalorder %s104, %s105
      %p119 = scmp.eq.s32.totalorder %s24, 1
      %p120 = por %p118, %p119
      %p122 = scmp.ne.s32.totalorder %s105, %s121
      %p123 = scmp.eq.s32.totalorder %s24, 0
      %p124 = por %p122, %p123
      %p125 = scmp.le.s32.totalorder 1, %s18
      %p126 = scmp.lt.s32.totalorder %s18, 3
      %p127 = pnand %p125, %p126
      %p128 = pneg %p127
      // Predicated region
      $region9: #{tpu_custom_call.1} parent=5 // pred_check
        _
      $region10: #{tpu_custom_call.1} parent=5 // pred_check_branch
        %130 = sbr.rel (%p127) target = $region12
      $region11: #{tpu_custom_call.1} parent=5 // pred_region
        %s131 = ssub.s32 %s18, 1
        // Predicated region
        $region13: #{tpu_custom_call.1} parent=11 // pred_check
          %p132 = pneg %p91
        $region14: #{tpu_custom_call.1} parent=11 // pred_check_branch
          %134 = sbr.rel (%p132) target = $region16
        $region15: #{tpu_custom_call.1} parent=11 // pred_region
          %136 = vsyncadd [#allocation6], 0
          %s137 = sshll.u32 %s2, 4
          %s138 = int_to_ptr.hbm [resolvable:$true] %s137
          %s139 = sshll.u32 [#allocation7], 4
          %s140 = int_to_ptr.vmem [resolvable:$true] %s139
          %145 = dma.hbm_to_vmem [thread:$0]  %s138, 512, %s140, [#allocation6], 128, 128, 8
        $region16: #{tpu_custom_call.1} parent=11 // pred_fallthru
          _
      $region12: #{tpu_custom_call.1} parent=5 // pred_fallthru
        _
      %p146 = scmp.lt.s32.totalorder %s18, 2
      // Predicated region
      $region17: #{tpu_custom_call.1} parent=5 // pred_check
        %p147 = pneg %p146
      $region18: #{tpu_custom_call.1} parent=5 // pred_check_branch
        %149 = sbr.rel (%p147) target = $region20
      $region19: #{tpu_custom_call.1} parent=5 // pred_region
        // Predicated region
        $region21: #{tpu_custom_call.1} parent=19 // pred_check
          %p150 = pneg %p38
        $region22: #{tpu_custom_call.1} parent=19 // pred_check_branch
          %152 = sbr.rel (%p150) target = $region24
        $region23: #{tpu_custom_call.1} parent=19 // pred_region
          %s153 = sand.u32 %s28, 1
          %s154 = scalar_lea.sflag [#allocation3], %s153
          %s155 = sand.u32 %s28, 1
          %s156 = smul.addr %s155, 80
          %s157 = scalar_lea.vmem [#allocation2], %s156
          %s158 = smul.u32 2, %s18
          %160 = vsyncadd %s154, 0
          %s161 = smul.addr %s158, 8
          %s162 = scalar_lea.hbm %s0, %s161
          %s163 = sshll.u32 %s162, 4
          %s164 = int_to_ptr.hbm [resolvable:$true] %s163
          %s165 = sshll.u32 %s157, 4
          %s166 = int_to_ptr.vmem [resolvable:$true] %s165
          %171 = dma.hbm_to_vmem [thread:$0]  %s164, 1280, %s166, %s154, 512, 256, 16
        $region24: #{tpu_custom_call.1} parent=19 // pred_fallthru
          _
        // Predicated region
        $region25: #{tpu_custom_call.1} parent=19 // pred_check
          %p172 = pneg %p64
        $region26: #{tpu_custom_call.1} parent=19 // pred_check_branch
          %174 = sbr.rel (%p172) target = $region28
        $region27: #{tpu_custom_call.1} parent=19 // pred_region
          %s175 = sand.u32 %s18, 1
          %s176 = scalar_lea.sflag [#allocation6], %s175
          %s177 = sand.u32 %s54, 1
          %s178 = smul.addr %s177, 8
          %s179 = scalar_lea.vmem [#allocation5], %s178
          %s180 = smul.u32 2, %s18
          %182 = vsyncadd %s176, 0
          %s183 = smul.addr %s180, 4
          %s184 = scalar_lea.hbm %s1, %s183
          %s186 = sshll.u32 %s184, 4
          %s187 = int_to_ptr.hbm [resolvable:$true] %s186
          %s188 = sshll.u32 %s179, 4
          %s189 = int_to_ptr.vmem [resolvable:$true] %s188
          %191 = dma.hbm_to_vmem [thread:$0]  %s187, 128, %s189, %s176
        $region28: #{tpu_custom_call.1} parent=19 // pred_fallthru
          _
      $region20: #{tpu_custom_call.1} parent=5 // pred_fallthru
        _
      %p192 = scmp.le.s32.totalorder 1, %s18
      %p193 = scmp.lt.s32.totalorder %s18, 3
      %p194 = pnand %p192, %p193
      %p195 = pneg %p194
      // Predicated region
      $region29: #{tpu_custom_call.1} parent=5 // pred_check
        _
      $region30: #{tpu_custom_call.1} parent=5 // pred_check_branch
        %197 = sbr.rel (%p194) target = $region32
      $region31: #{tpu_custom_call.1} parent=5 // pred_region
        %s198 = ssub.s32 %s18, 1
        %s199 = sand.u32 %s31, 1
        %s200 = scalar_lea.sflag [#allocation3], %s199
        %s201 = sand.u32 %s31, 1
        %s202 = smul.addr %s201, 80
        %s203 = scalar_lea.vmem [#allocation2], %s202
        // Predicated region
        $region33: #{tpu_custom_call.1} parent=31 // pred_check
          %p204 = pneg %p44
        $region34: #{tpu_custom_call.1} parent=31 // pred_check_branch
          %206 = sbr.rel (%p204) target = $region36
        $region35: #{tpu_custom_call.1} parent=31 // pred_region
          %208 = dma.done %s200, 1280
        $region36: #{tpu_custom_call.1} parent=31 // pred_fallthru
          _
        %s209 = sand.u32 %s23, 1
        %s210 = scalar_lea.sflag [#allocation6], %s209
        %s211 = sand.u32 %s57, 1
        %s212 = smul.addr %s211, 8
        %s213 = scalar_lea.vmem [#allocation5], %s212
        // Predicated region
        $region37: #{tpu_custom_call.1} parent=31 // pred_check
          %p214 = pneg %p70
        $region38: #{tpu_custom_call.1} parent=31 // pred_check_branch
          %216 = sbr.rel (%p214) target = $region40
        $region39: #{tpu_custom_call.1} parent=31 // pred_region
          %218 = dma.done %s210, 128
        $region40: #{tpu_custom_call.1} parent=31 // pred_fallthru
          _
        // Predicated region
        $region41: #{tpu_custom_call.1} parent=31 // pred_check
          %p219 = pneg %p91
        $region42: #{tpu_custom_call.1} parent=31 // pred_check_branch
          %221 = sbr.rel (%p219) target = $region44
        $region43: #{tpu_custom_call.1} parent=31 // pred_region
          %223 = dma.done [#allocation6], 512
        $region44: #{tpu_custom_call.1} parent=31 // pred_fallthru
          _
        %s224 = sand.u32 %s31, 1
        %s225 = scalar_lea.sflag [#allocation3], %s224
        %s226 = sand.u32 %s31, 1
        %s227 = smul.addr %s226, 80
        %s228 = scalar_lea.vmem [#allocation2], %s227
        %p229 = pneg %p44
        %p230 = pneg %p41
        %s231 = sand.u32 %s23, 1
        %s232 = scalar_lea.sflag [#allocation6], %s231
        %s233 = sand.u32 %s57, 1
        %s234 = smul.addr %s233, 8
        %s235 = scalar_lea.vmem [#allocation5], %s234
        %p236 = pneg %p70
        %p237 = pneg %p67
        %p238 = pneg %p91
        %p239 = pneg %p88
        %p240 = pneg %p117
        %p241 = pneg %p114
        %s242 = sand.u32 %s104, 1
        %s243 = scalar_lea.sflag [#allocation4], %s242
        %s244 = sand.u32 %s104, 1
        %s245 = smul.addr %s244, 16
        %s246 = scalar_lea.vmem [#allocation8], %s245
        %s247 = smul.u32 2, %s23
        %s248 = smul.u32 2, %s23
        %s249 = smul.u32 2, %s23
        %v250 = vld [vmem:[#allocation7] sm:$0xff]
        %v251 = vld [vmem:[#allocation7 + $0x8] sm:$0xff]
        %v252 = vld [vmem:[#allocation7 + $0x10] sm:$0xff]
        %v253 = vld [vmem:[#allocation7 + $0x18] sm:$0xff]
        %v254 = vld [vmem:[%s203] sm:$0xff]
        %v255 = vld [vmem:[%s203 + $0x8] sm:$0xff]
        %v256 = vld [vmem:[%s203 + $0x10] sm:$0xff]
        %v257 = vld [vmem:[%s203 + $0x18] sm:$0xff]
        %v258 = vld [vmem:[%s203 + $0x20] sm:$0xff]
        %v259 = vld [vmem:[%s203 + $0x28] sm:$0xff]
        %v260 = vld [vmem:[%s203 + $0x30] sm:$0xff]
        %v261 = vld [vmem:[%s203 + $0x38] sm:$0xff]
        %v262 = vld [vmem:[%s203 + $0x40] sm:$0x7]
        %v263 = vld [vmem:[%s203 + $0x48] sm:$0x7]
        %vm264 = vcmask 285696
        %v266 = vsel %vm264, %v250, 0
        %v269 = vsel %vm264, %v251, 0
        %v272 = vsel %vm264, %v252, 0
        %v275 = vsel %vm264, %v253, 0
        %vm277 = vcmask 1042432
        %v279 = vsel %vm277, %v262, 0
        %v282 = vsel %vm277, %v263, 0
        %284 = vmatpush.msra.mxu0 0.0
        %285 = vmatpush.msra.mxu0 0.0
        %286 = vmatpush.msra.mxu0 0.0
        %287 = vmatpush.msra.mxu0 0.0
        %288 = vmatpush.msra.mxu0 0.0
        %289 = vmatpush.msra.mxu0 0.0
        %290 = vmatpush.msra.mxu0 0.0
        %291 = vmatpush.msra.mxu0 0.0
        %292 = vmatpush.msra.mxu0 0.0
        %293 = vmatpush.msra.mxu0 0.0
        %294 = vmatpush.msra.mxu0 0.0
        %295 = vmatpush.msra.mxu0 %v279
        %296 = vmatpush.msra.mxu0 %v260
        %297 = vmatpush.msra.mxu0 %v258
        %298 = vmatpush.msra.mxu0 %v256
        %299 = vmatpush.msra.mxu0 %v254
        %300 = vmatmul.f32.gmra.mxu0 %v266
        %v301 = vpop.f32.mrf.mxu0
        %v302 = vadd.f32 0.0, %v301
        %303 = vmatmul.f32.gmra.mxu0 %v269
        %v304 = vpop.f32.mrf.mxu0
        %v305 = vadd.f32 0.0, %v304
        %306 = vmatmul.f32.gmra.mxu0 %v272
        %v307 = vpop.f32.mrf.mxu0
        %v308 = vadd.f32 0.0, %v307
        %309 = vmatmul.f32.gmra.mxu0 %v275
        %v310 = vpop.f32.mrf.mxu0
        %v311 = vadd.f32 0.0, %v310
        %312 = vdwg.mxu0
        %313 = vmatpush.msra.mxu0 0.0
        %314 = vmatpush.msra.mxu0 0.0
        %315 = vmatpush.msra.mxu0 0.0
        %316 = vmatpush.msra.mxu0 0.0
        %317 = vmatpush.msra.mxu0 0.0
        %318 = vmatpush.msra.mxu0 0.0
        %319 = vmatpush.msra.mxu0 0.0
        %320 = vmatpush.msra.mxu0 0.0
        %321 = vmatpush.msra.mxu0 0.0
        %322 = vmatpush.msra.mxu0 0.0
        %323 = vmatpush.msra.mxu0 0.0
        %324 = vmatpush.msra.mxu0 %v282
        %325 = vmatpush.msra.mxu0 %v261
        %326 = vmatpush.msra.mxu0 %v259
        %327 = vmatpush.msra.mxu0 %v257
        %328 = vmatpush.msra.mxu0 %v255
        %329 = vmatmul.f32.gmra.mxu0 %v266
        %v330 = vpop.f32.mrf.mxu0
        %v331 = vadd.f32 0.0, %v330
        %332 = vmatmul.f32.gmra.mxu0 %v269
        %v333 = vpop.f32.mrf.mxu0
        %v334 = vadd.f32 0.0, %v333
        %335 = vmatmul.f32.gmra.mxu0 %v272
        %v336 = vpop.f32.mrf.mxu0
        %v337 = vadd.f32 0.0, %v336
        %338 = vmatmul.f32.gmra.mxu0 %v275
        %v339 = vpop.f32.mrf.mxu0
        %v340 = vadd.f32 0.0, %v339
        %341 = vdwg.mxu0
        %v342 = vld [vmem:[%s213] ss:$4 sm:$0x3]
        %v344 = vperm.slane %v342, 0
        %v345 = vperm.slane %v342, 1
        %v348 = vmul.f32 %v344, %v305
        %v349 = vmul.f32 %v345, %v334
        %v350 = vadd.f32 %v302, %v348
        %v351 = vadd.f32 %v331, %v349
        %s352 = scalar_lea.vmem %s213, 1 [#allocation5]
        %v353 = vld [vmem:[%s352] ss:$4 sm:$0x3]
        %v355 = vperm.slane %v353, 0
        %v356 = vperm.slane %v353, 1
        %v359 = vmul.f32 %v355, %v308
        %v360 = vmul.f32 %v356, %v337
        %v361 = vadd.f32 %v350, %v359
        %v362 = vadd.f32 %v351, %v360
        %s363 = scalar_lea.vmem %s213, 2 [#allocation5]
        %v364 = vld [vmem:[%s363] ss:$4 sm:$0x3]
        %v366 = vperm.slane %v364, 0
        %v367 = vperm.slane %v364, 1
        %v370 = vmul.f32 %v366, %v311
        %v371 = vmul.f32 %v367, %v340
        %v372 = vadd.f32 %v361, %v370
        %v373 = vadd.f32 %v362, %v371
        %374 = vst [vmem:[%s246] sm:$0xff] %v372
        %375 = vst [vmem:[%s246 + $0x8] sm:$0xff] %v373
        %s376 = sand.u32 %s104, 1
        %s377 = scalar_lea.sflag [#allocation4], %s376
        %s378 = sand.u32 %s104, 1
        %s379 = smul.addr %s378, 16
        %s380 = scalar_lea.vmem [#allocation8], %s379
        // Predicated region
        $region45: #{tpu_custom_call.1} parent=31 // pred_check
          %p381 = pneg %p114
        $region46: #{tpu_custom_call.1} parent=31 // pred_check_branch
          %383 = sbr.rel (%p381) target = $region48
        $region47: #{tpu_custom_call.1} parent=31 // pred_region
          %s384 = smul.u32 2, %s23
          %386 = vsyncadd %s377, 0
          %s387 = smul.addr %s384, 8
          %s388 = scalar_lea.hbm %s3, %s387
          %s390 = sshll.u32 %s380, 4
          %s391 = int_to_ptr.vmem [resolvable:$true] %s390
          %s392 = sshll.u32 %s388, 4
          %s393 = int_to_ptr.hbm [resolvable:$true] %s392
          %395 = dma.vmem_to_hbm [thread:$0]  %s391, 256, %s393, %s377
        $region48: #{tpu_custom_call.1} parent=31 // pred_fallthru
          _
      $region32: #{tpu_custom_call.1} parent=5 // pred_fallthru
        _
      %p396 = scmp.le.s32.totalorder 2, %s18
      // Predicated region
      $region49: #{tpu_custom_call.1} parent=5 // pred_check
        %p397 = pneg %p396
      $region50: #{tpu_custom_call.1} parent=5 // pred_check_branch
        %399 = sbr.rel (%p397) target = $region52
      $region51: #{tpu_custom_call.1} parent=5 // pred_region
        %s400 = ssub.s32 %s18, 2
        // Predicated region
        $region53: #{tpu_custom_call.1} parent=51 // pred_check
          %p401 = pneg %p120
        $region54: #{tpu_custom_call.1} parent=51 // pred_check_branch
          %403 = sbr.rel (%p401) target = $region56
        $region55: #{tpu_custom_call.1} parent=51 // pred_region
          %s404 = sand.u32 %s105, 1
          %s405 = scalar_lea.sflag [#allocation4], %s404
          %s406 = sand.u32 %s105, 1
          %s407 = smul.addr %s406, 16
          %s408 = scalar_lea.vmem [#allocation8], %s407
          %410 = dma.done %s405, 256
        $region56: #{tpu_custom_call.1} parent=51 // pred_fallthru
          _
      $region52: #{tpu_custom_call.1} parent=5 // pred_fallthru
        _
    $region6: #{tpu_custom_call.1} parent=1 // loop_footer
      %s22 = sadd.s32 1, %s18
    $region7: #{tpu_custom_call.1} parent=1 // loop_footer_branch
      %17 = sbr.rel target = $region3
    $region8: #{tpu_custom_call.1} parent=1 // loop_exit
      _
    %411 = vsyncpa [#allocation3], 1
    %s412 = scalar_lea.sflag [#allocation3], 1
    %413 = vsyncpa %s412, 1
    %414 = vsyncpa [#allocation6], 1
    %s415 = scalar_lea.sflag [#allocation6], 1
    %416 = vsyncpa %s415, 1
    %417 = vsyncpa [#allocation4], 1
    %s418 = scalar_lea.sflag [#allocation4], 1
    %419 = vsyncpa %s418, 1

</llo_original>
